<compile_context>
chip_gen: v7x
topology: tpu7x:2x2x1
jax: 0.10.0
libtpu: 0.0.40
codegen_flags: <defaults>
</compile_context>

<pallas_src>
import functools
import math

import jax
import jax.numpy as jnp
from jax.experimental import pallas as pl
from jax.experimental.pallas import tpu as pltpu

DIMS = [64, 32, 16]  # matches VanillaEncoder(dimensions=[64, 32, 16])

_INV_SQRT2 = 1.0 / math.sqrt(2.0)


def _exact_gelu_f32(x):
    # PyTorch nn.GELU() default is the exact (erf) formulation.
    return 0.5 * x * (1.0 + jax.lax.erf(x * _INV_SQRT2))


def mlp_kernel(x_ref, w1_ref, b1_ref, w2_ref, b2_ref, o_ref):
    # First Linear: MXU consumes the streamed dtype (bf16/f32), accumulates in f32.
    h = jnp.dot(x_ref[...], w1_ref[...], preferred_element_type=jnp.float32)
    h = _exact_gelu_f32(h + b1_ref[...])        # bias + exact GELU in f32 (EUP/VPU)
    h = h.astype(w2_ref.dtype)                  # back to streamed dtype for the 2nd MXU pass
    y = jnp.dot(h, w2_ref[...], preferred_element_type=jnp.float32) + b2_ref[...]
    o_ref[...] = y.astype(o_ref.dtype)


def _round_up(n, m):
    return ((n + m - 1) // m) * m


@functools.partial(jax.jit, static_argnames=("tm", "compute_dtype", "out_dtype"))
def vanilla_encoder(x, w1, b1, w2, b2, *, tm=4096, compute_dtype=jnp.bfloat16,
                    out_dtype=None):
    """x: (B, 64); w1: (64, 32); b1: (32,)|(1,32); w2: (32, 16); b2: (16,)|(1,16)."""
    B, d_in = x.shape
    d_hid = w1.shape[1]
    d_out = w2.shape[1]
    if out_dtype is None:
        out_dtype = x.dtype

    # Effective row tile: big enough to amortize the per-step pipeline overhead, clamped so
    # tiny batches still get a legal (8, .)-aligned block; pad rows to a whole number of tiles
    # (padded rows are row-independent garbage and are sliced off on return).
    tm_eff = min(tm, _round_up(B, 8))
    B_pad = _round_up(B, tm_eff)

    xc = x.astype(compute_dtype)
    if B_pad != B:
        xc = jnp.pad(xc, ((0, B_pad - B), (0, 0)))
    w1c = w1.astype(compute_dtype)
    w2c = w2.astype(compute_dtype)
    b1f = jnp.asarray(b1, jnp.float32).reshape(1, d_hid)
    b2f = jnp.asarray(b2, jnp.float32).reshape(1, d_out)

    grid = (B_pad // tm_eff,)
    out = pl.pallas_call(
        mlp_kernel,
        out_shape=jax.ShapeDtypeStruct((B_pad, d_out), out_dtype),
        grid_spec=pltpu.PrefetchScalarGridSpec(
            num_scalar_prefetch=0,
            grid=grid,
            in_specs=[
                pl.BlockSpec((tm_eff, d_in), lambda i: (i, 0)),   # x row tile (streamed)
                pl.BlockSpec((d_in, d_hid), lambda i: (0, 0)),    # W1 (full, resident)
                pl.BlockSpec((1, d_hid), lambda i: (0, 0)),       # b1 (f32, resident)
                pl.BlockSpec((d_hid, d_out), lambda i: (0, 0)),   # W2 (full, resident)
                pl.BlockSpec((1, d_out), lambda i: (0, 0)),       # b2 (f32, resident)
            ],
            out_specs=pl.BlockSpec((tm_eff, d_out), lambda i: (i, 0)),
        ),
        compiler_params=pltpu.CompilerParams(
            dimension_semantics=("parallel",)),  # lets v7x shard grid steps over its 2 TCs
    )(xc, w1c, b1f, w2c, b2f)

    return out[:B] if B_pad != B else out


def init_params(key, dims):
    """Deterministic Linear params (uniform(-1/sqrt(fan_in), 1/sqrt(fan_in)), like torch)."""
    params = []
    for i in range(len(dims) - 1):
        key, kw, kb = jax.random.split(key, 3)
        fan_in = dims[i]
        bound = 1.0 / jnp.sqrt(fan_in)
        # stored as (in, out), i.e. transposed relative to torch's (out, in)
        w = jax.random.uniform(kw, (dims[i], dims[i + 1]), jnp.float32, -bound, bound)
        b = jax.random.uniform(kb, (1, dims[i + 1]), jnp.float32, -bound, bound)
        params.append((w, b))
    return params


def reference(x, params):
    h = x
    n = len(params)
    for i, (w, b) in enumerate(params):
        h = h @ w + b
        if i < n - 1:
            h = jax.nn.gelu(h, approximate=False)  # exact GELU, matches nn.GELU()
    return h


if __name__ == "__main__":
    key = jax.random.PRNGKey(0)
    key, kx = jax.random.split(key)
    B = 64
    x = jax.random.normal(kx, (B, DIMS[0]), jnp.float32)

    params = init_params(key, DIMS)
    (w1, b1), (w2, b2) = params
    ref = reference(x, params)

    # 1) Exact path (f32 streams) — tight tolerance.
    out_f32 = vanilla_encoder(x, w1, b1, w2, b2, compute_dtype=jnp.float32)
    out_f32 = jax.block_until_ready(out_f32)
    assert out_f32.shape == (B, DIMS[-1]), out_f32.shape
    assert jnp.allclose(out_f32, ref, atol=1e-5, rtol=1e-5), \
        float(jnp.max(jnp.abs(out_f32 - ref)))

    # 2) Default perf path (bf16 streams, f32 accumulate) — bf16-level tolerance.
    out_bf16 = vanilla_encoder(x, w1, b1, w2, b2)
    out_bf16 = jax.block_until_ready(out_bf16)
    assert out_bf16.shape == (B, DIMS[-1]), out_bf16.shape
    assert jnp.allclose(out_bf16.astype(jnp.float32), ref, atol=5e-2, rtol=5e-2), \
        float(jnp.max(jnp.abs(out_bf16.astype(jnp.float32) - ref)))

    # 3) Ragged batch (exercises pad/slice path).
    Br = 50
    xr = x[:Br]
    out_r = vanilla_encoder(xr, w1, b1, w2, b2, compute_dtype=jnp.float32)
    out_r = jax.block_until_ready(out_r)
    assert out_r.shape == (Br, DIMS[-1]), out_r.shape
    assert jnp.allclose(out_r, ref[:Br], atol=1e-5, rtol=1e-5), \
        float(jnp.max(jnp.abs(out_r - ref[:Br])))

    print("KERNEL_OK")
</pallas_src>

<mosaic_0001>
module attributes {stable_mosaic.version = 11 : i64} {
  func.func @mlp_kernel(%arg0: i32, %arg1: memref<64x64xf32, #tpu.memory_space<vmem>>, %arg2: memref<64x32xf32, #tpu.memory_space<vmem>>, %arg3: memref<1x32xf32, #tpu.memory_space<vmem>>, %arg4: memref<32x16xf32, #tpu.memory_space<vmem>>, %arg5: memref<1x16xf32, #tpu.memory_space<vmem>>, %arg6: memref<64x16xf32, #tpu.memory_space<vmem>>) attributes {dimension_semantics = [#tpu.dimension_semantics<parallel>], iteration_bounds = array<i64: 1>, scalar_prefetch = 0 : i64, scratch_operands = 0 : i64, tpu.core_type = #tpu.core_type<tc>, window_params = [{transform_indices = @transform_0, window_bounds = array<i64: 64, 64>}, {pipeline_mode = #tpu.pipeline_mode<synchronous>, transform_indices = @transform_1, window_bounds = array<i64: 64, 32>}, {pipeline_mode = #tpu.pipeline_mode<synchronous>, transform_indices = @transform_2, window_bounds = array<i64: 1, 32>}, {pipeline_mode = #tpu.pipeline_mode<synchronous>, transform_indices = @transform_3, window_bounds = array<i64: 32, 16>}, {pipeline_mode = #tpu.pipeline_mode<synchronous>, transform_indices = @transform_4, window_bounds = array<i64: 1, 16>}, {transform_indices = @transform_5, window_bounds = array<i64: 64, 16>}]} {
    %c0 = arith.constant 0 : index
    %c0_0 = arith.constant 0 : index
    %0 = vector.load %arg1[%c0, %c0_0] : memref<64x64xf32, #tpu.memory_space<vmem>>, vector<64x64xf32>
    %c0_1 = arith.constant 0 : index
    %c0_2 = arith.constant 0 : index
    %1 = vector.load %arg2[%c0_1, %c0_2] : memref<64x32xf32, #tpu.memory_space<vmem>>, vector<64x32xf32>
    %cst = arith.constant dense<0.000000e+00> : vector<64x32xf32>
    %2 = tpu.matmul %0, %1, %cst {dimension_numbers = #tpu.dot_dimension_numbers<[1], [0], [0], [1], [0, 0, 1, 1], [], []>} : vector<64x64xf32>, vector<64x32xf32>, vector<64x32xf32> -> vector<64x32xf32>
    %c0_3 = arith.constant 0 : index
    %c0_4 = arith.constant 0 : index
    %3 = vector.load %arg3[%c0_3, %c0_4] : memref<1x32xf32, #tpu.memory_space<vmem>>, vector<1x32xf32>
    %4 = vector.broadcast %3 : vector<1x32xf32> to vector<64x32xf32>
    %5 = arith.addf %2, %4 : vector<64x32xf32>
    %cst_5 = arith.constant 5.000000e-01 : f32
    %6 = vector.broadcast %cst_5 : f32 to vector<64x32xf32>
    %7 = arith.mulf %6, %5 : vector<64x32xf32>
    %cst_6 = arith.constant 0.707106769 : f32
    %8 = vector.broadcast %cst_6 : f32 to vector<64x32xf32>
    %9 = arith.mulf %5, %8 : vector<64x32xf32>
    %10 = math.erf %9 : vector<64x32xf32>
    %cst_7 = arith.constant 1.000000e+00 : f32
    %11 = vector.broadcast %cst_7 : f32 to vector<64x32xf32>
    %12 = arith.addf %11, %10 : vector<64x32xf32>
    %13 = arith.mulf %7, %12 : vector<64x32xf32>
    %c0_8 = arith.constant 0 : index
    %c0_9 = arith.constant 0 : index
    %14 = vector.load %arg4[%c0_8, %c0_9] : memref<32x16xf32, #tpu.memory_space<vmem>>, vector<32x16xf32>
    %cst_10 = arith.constant dense<0.000000e+00> : vector<64x16xf32>
    %15 = tpu.matmul %13, %14, %cst_10 {dimension_numbers = #tpu.dot_dimension_numbers<[1], [0], [0], [1], [0, 0, 1, 1], [], []>} : vector<64x32xf32>, vector<32x16xf32>, vector<64x16xf32> -> vector<64x16xf32>
    %c0_11 = arith.constant 0 : index
    %c0_12 = arith.constant 0 : index
    %16 = vector.load %arg5[%c0_11, %c0_12] : memref<1x16xf32, #tpu.memory_space<vmem>>, vector<1x16xf32>
    %17 = vector.broadcast %16 : vector<1x16xf32> to vector<64x16xf32>
    %18 = arith.addf %15, %17 : vector<64x16xf32>
    %c0_13 = arith.constant 0 : index
    %c0_14 = arith.constant 0 : index
    %19 = vector.load %arg6[%c0_13, %c0_14] : memref<64x16xf32, #tpu.memory_space<vmem>>, vector<64x16xf32>
    tpu.vector_store %arg6[%c0_13, %c0_14], %18 {strides = array<i32>} : memref<64x16xf32, #tpu.memory_space<vmem>>, vector<64x16xf32>,
    return
  }
  func.func @transform_0(%arg0: i32) -> (i32, i32) {
    %c0_i32 = arith.constant 0 : i32
    %c0_i32_0 = arith.constant 0 : i32
    return %arg0, %c0_i32 : i32, i32
  }
  func.func @transform_1(%arg0: i32) -> (i32, i32) {
    %c0_i32 = arith.constant 0 : i32
    %c0_i32_0 = arith.constant 0 : i32
    %c0_i32_1 = arith.constant 0 : i32
    return %c0_i32, %c0_i32_0 : i32, i32
  }
  func.func @transform_2(%arg0: i32) -> (i32, i32) {
    %c0_i32 = arith.constant 0 : i32
    %c0_i32_0 = arith.constant 0 : i32
    %c0_i32_1 = arith.constant 0 : i32
    return %c0_i32, %c0_i32_0 : i32, i32
  }
  func.func @transform_3(%arg0: i32) -> (i32, i32) {
    %c0_i32 = arith.constant 0 : i32
    %c0_i32_0 = arith.constant 0 : i32
    %c0_i32_1 = arith.constant 0 : i32
    return %c0_i32, %c0_i32_0 : i32, i32
  }
  func.func @transform_4(%arg0: i32) -> (i32, i32) {
    %c0_i32 = arith.constant 0 : i32
    %c0_i32_0 = arith.constant 0 : i32
    %c0_i32_1 = arith.constant 0 : i32
    return %c0_i32, %c0_i32_0 : i32, i32
  }
  func.func @transform_5(%arg0: i32) -> (i32, i32) {
    %c0_i32 = arith.constant 0 : i32
    %c0_i32_0 = arith.constant 0 : i32
    return %arg0, %c0_i32 : i32, i32
  }
}

</mosaic_0001>

<llo_original>
// kernel: vanilla_encoder.1
$region0: #{vanilla_encoder.1}
  #allocation0 [shape = 'u32[]', space=smem, size = 0x4, offset = 0x4, fixed_abs, tag = 'smem constant byte address 0x4 - core index']
  #allocation1 [shape = 'u32[144,128]{1,0:T(1,128)}', space=vmem, size = 0x12000, scoped, tag = 'internal scratch']
  %s0 = inlined_call_operand.vmem [shape: f32[64,64], index: 0, kind: input, shape index: {}]
  %s1 = inlined_call_operand.vmem [shape: f32[64,32], index: 1, kind: input, shape index: {}]
  %s2 = inlined_call_operand.vmem [shape: f32[1,32], index: 2, kind: input, shape index: {}]
  %s3 = inlined_call_operand.vmem [shape: f32[32,16], index: 3, kind: input, shape index: {}]
  %s4 = inlined_call_operand.vmem [shape: f32[1,16], index: 4, kind: input, shape index: {}]
  %s5 = inlined_call_operand.vmem [shape: f32[64,16], index: 5, kind: output, shape index: {}]
  %s6 = sld [smem:[#allocation0]]
  $region30: #{vanilla_encoder.1} parent=0
    _
  %s8 = ssub.s32 1, %s6
  %s9 = scalar_select 0, %s8, %s6
  // Predicated region
  $region2: #{vanilla_encoder.1} parent=0 // pred_check
    _
  $region3: #{vanilla_encoder.1} parent=0 // pred_check_branch
    %11 = sbr.rel (0) target = $region5
  $region4: #{vanilla_encoder.1} parent=0 // pred_region
    _
  $region5: #{vanilla_encoder.1} parent=0 // pred_fallthru
    _
  // Predicated region
  $region6: #{vanilla_encoder.1} parent=0 // pred_check
    _
  $region7: #{vanilla_encoder.1} parent=0 // pred_check_branch
    %13 = sbr.rel (0) target = $region9
  $region8: #{vanilla_encoder.1} parent=0 // pred_region
    _
  $region9: #{vanilla_encoder.1} parent=0 // pred_fallthru
    _
  // Predicated region
  $region10: #{vanilla_encoder.1} parent=0 // pred_check
    _
  $region11: #{vanilla_encoder.1} parent=0 // pred_check_branch
    %15 = sbr.rel (0) target = $region13
  $region12: #{vanilla_encoder.1} parent=0 // pred_region
    _
  $region13: #{vanilla_encoder.1} parent=0 // pred_fallthru
    _
  // Predicated region
  $region14: #{vanilla_encoder.1} parent=0 // pred_check
    _
  $region15: #{vanilla_encoder.1} parent=0 // pred_check_branch
    %17 = sbr.rel (0) target = $region17
  $region16: #{vanilla_encoder.1} parent=0 // pred_region
    _
  $region17: #{vanilla_encoder.1} parent=0 // pred_fallthru
    _
  // Predicated region
  $region18: #{vanilla_encoder.1} parent=0 // pred_check
    _
  $region19: #{vanilla_encoder.1} parent=0 // pred_check_branch
    %19 = sbr.rel (0) target = $region21
  $region20: #{vanilla_encoder.1} parent=0 // pred_region
    _
  $region21: #{vanilla_encoder.1} parent=0 // pred_fallthru
    _
  %v20 = vld [vmem:[%s0] sm:$0xff]
  %v21 = vld [vmem:[%s0 + $0x8] sm:$0xff]
  %v22 = vld [vmem:[%s0 + $0x10] sm:$0xff]
  %v23 = vld [vmem:[%s0 + $0x18] sm:$0xff]
  %v24 = vld [vmem:[%s0 + $0x20] sm:$0xff]
  %v25 = vld [vmem:[%s0 + $0x28] sm:$0xff]
  %v26 = vld [vmem:[%s0 + $0x30] sm:$0xff]
  %v27 = vld [vmem:[%s0 + $0x38] sm:$0xff]
  %v28 = vld [vmem:[%s1] sm:$0xff]
  %v29 = vld [vmem:[%s1 + $0x8] sm:$0xff]
  %v30 = vld [vmem:[%s1 + $0x10] sm:$0xff]
  %v31 = vld [vmem:[%s1 + $0x18] sm:$0xff]
  %v32 = vld [vmem:[%s1 + $0x20] sm:$0xff]
  %v33 = vld [vmem:[%s1 + $0x28] sm:$0xff]
  %v34 = vld [vmem:[%s1 + $0x30] sm:$0xff]
  %v35 = vld [vmem:[%s1 + $0x38] sm:$0xff]
  %v36 = vld [vmem:[%s2] sm:$0x1]
  %v38 = vlaneseq
  %v39 = vshrl.u32 %v38, 7
  %v40 = vsub.s32 0, %v39
  %v41 = vrot.slane %v36, %v40
  %vm43 = vcmask 523264
  %v45 = vsel %vm43, %v20, 0
  %v48 = vsel %vm43, %v21, 0
  %v51 = vsel %vm43, %v22, 0
  %v54 = vsel %vm43, %v23, 0
  %v57 = vsel %vm43, %v24, 0
  %v60 = vsel %vm43, %v25, 0
  %v63 = vsel %vm43, %v26, 0
  %v66 = vsel %vm43, %v27, 0
  %68 = vmatprep.subr.mxu0 0.0
  %69 = vmatpush1.msra.mxu0 %v28
  %70 = vmatprep.subr.mxu0 0.0
  %71 = vmatpush1.msra.mxu0 %v29
  %72 = vmatprep.subr.mxu0 0.0
  %73 = vmatpush1.msra.mxu0 %v30
  %74 = vmatprep.subr.mxu0 0.0
  %75 = vmatpush1.msra.mxu0 %v31
  %76 = vmatprep.subr.mxu0 0.0
  %77 = vmatpush1.msra.mxu0 %v32
  %78 = vmatprep.subr.mxu0 0.0
  %79 = vmatpush1.msra.mxu0 %v33
  %80 = vmatprep.subr.mxu0 0.0
  %81 = vmatpush1.msra.mxu0 %v34
  %82 = vmatprep.subr.mxu0 0.0
  %83 = vmatpush1.msra.mxu0 %v35
  %84 = vmatprep.subr.mxu0 0.0
  %85 = vmatpush1.msra.mxu0 0.0
  %86 = vmatprep.subr.mxu0 0.0
  %87 = vmatpush1.msra.mxu0 0.0
  %88 = vmatprep.subr.mxu0 0.0
  %89 = vmatpush1.msra.mxu0 0.0
  %90 = vmatprep.subr.mxu0 0.0
  %91 = vmatpush1.msra.mxu0 0.0
  %92 = vmatprep.subr.mxu0 0.0
  %93 = vmatpush1.msra.mxu0 0.0
  %94 = vmatprep.subr.mxu0 0.0
  %95 = vmatpush1.msra.mxu0 0.0
  %96 = vmatprep.subr.mxu0 0.0
  %97 = vmatpush1.msra.mxu0 0.0
  %98 = vmatprep.subr.mxu0 0.0
  %99 = vmatpush1.msra.mxu0 0.0
  %100 = vmatprep.subr.mxu0 0.0
  %101 = vmatpush1.msra.mxu0 0.0
  %102 = vmatprep.subr.mxu0 0.0
  %103 = vmatpush1.msra.mxu0 0.0
  %104 = vmatprep.subr.mxu0 0.0
  %105 = vmatpush1.msra.mxu0 0.0
  %106 = vmatprep.subr.mxu0 0.0
  %107 = vmatpush1.msra.mxu0 0.0
  %108 = vmatprep.subr.mxu0 0.0
  %109 = vmatpush1.msra.mxu0 0.0
  %110 = vmatprep.subr.mxu0 0.0
  %111 = vmatpush1.msra.mxu0 0.0
  %112 = vmatprep.subr.mxu0 0.0
  %113 = vmatpush1.msra.mxu0 0.0
  %114 = vmatprep.subr.mxu0 0.0
  %115 = vmatpush1.msra.mxu0 0.0
  %116 = vmatprep.subr.mxu0 0.0
  %117 = vmatpush1.msra.mxu0 0.0
  %118 = vmatprep.subr.mxu0 0.0
  %119 = vmatpush1.msra.mxu0 0.0
  %120 = vmatprep.subr.mxu0 0.0
  %121 = vmatpush1.msra.mxu0 0.0
  %122 = vmatprep.subr.mxu0 0.0
  %123 = vmatpush1.msra.mxu0 0.0
  %124 = vmatprep.subr.mxu0 0.0
  %125 = vmatpush1.msra.mxu0 0.0
  %126 = vmatprep.subr.mxu0 0.0
  %127 = vmatpush1.msra.mxu0 0.0
  %128 = vmatprep.subr.mxu0 0.0
  %129 = vmatpush1.msra.mxu0 0.0
  %130 = vmatprep.subr.mxu0 0.0
  %131 = vmatpush1.msra.mxu0 0.0
  %132 = vmatprep.mubr.f32.mxu0 0.0
  %133 = vmatmul.mubr.f32.gmra.mrb[0].mxu0 %v45
  %v134 = vpop.f32.mrb[0].mxu0
  %v135 = vadd.f32 %v41, %v134
  %v136 = vpop.f32.mrb[0].mxu0
  %137 = vmatprep.mubr.f32.mxu0 0.0
  %138 = vmatmul.mubr.f32.gmra.mrb[0].mxu0 %v48
  %v139 = vpop.f32.mrb[0].mxu0
  %v140 = vadd.f32 %v41, %v139
  %v141 = vpop.f32.mrb[0].mxu0
  %142 = vmatprep.mubr.f32.mxu0 0.0
  %143 = vmatmul.mubr.f32.gmra.mrb[0].mxu0 %v51
  %v144 = vpop.f32.mrb[0].mxu0
  %v145 = vadd.f32 %v41, %v144
  %v146 = vpop.f32.mrb[0].mxu0
  %147 = vmatprep.mubr.f32.mxu0 0.0
  %148 = vmatmul.mubr.f32.gmra.mrb[0].mxu0 %v54
  %v149 = vpop.f32.mrb[0].mxu0
  %v150 = vadd.f32 %v41, %v149
  %v151 = vpop.f32.mrb[0].mxu0
  %152 = vmatprep.mubr.f32.mxu0 0.0
  %153 = vmatmul.mubr.f32.gmra.mrb[0].mxu0 %v57
  %v154 = vpop.f32.mrb[0].mxu0
  %v155 = vadd.f32 %v41, %v154
  %v156 = vpop.f32.mrb[0].mxu0
  %157 = vmatprep.mubr.f32.mxu0 0.0
  %158 = vmatmul.mubr.f32.gmra.mrb[0].mxu0 %v60
  %v159 = vpop.f32.mrb[0].mxu0
  %v160 = vadd.f32 %v41, %v159
  %v161 = vpop.f32.mrb[0].mxu0
  %162 = vmatprep.mubr.f32.mxu0 0.0
  %163 = vmatmul.mubr.f32.gmra.mrb[0].mxu0 %v63
  %v164 = vpop.f32.mrb[0].mxu0
  %v165 = vadd.f32 %v41, %v164
  %v166 = vpop.f32.mrb[0].mxu0
  %167 = vmatprep.mubr.f32.mxu0 0.0
  %168 = vmatmul.mubr.f32.gmra.mrb[0].mxu0 %v66
  %v169 = vpop.f32.mrb[0].mxu0
  %v170 = vadd.f32 %v41, %v169
  %v171 = vpop.f32.mrb[0].mxu0
  %172 = vdwg.mxu0
  %v173 = vmul.f32 %v135, 0.5
  %v174 = vmul.f32 %v140, 0.5
  %v175 = vmul.f32 %v145, 0.5
  %v176 = vmul.f32 %v150, 0.5
  %v177 = vmul.f32 %v155, 0.5
  %v178 = vmul.f32 %v160, 0.5
  %v179 = vmul.f32 %v165, 0.5
  %v180 = vmul.f32 %v170, 0.5
  %v181 = vmul.f32 %v135, 0.70710677
  %v182 = vmul.f32 %v140, 0.70710677
  %v183 = vmul.f32 %v145, 0.70710677
  %v184 = vmul.f32 %v150, 0.70710677
  %v185 = vmul.f32 %v155, 0.70710677
  %v186 = vmul.f32 %v160, 0.70710677
  %v187 = vmul.f32 %v165, 0.70710677
  %v188 = vmul.f32 %v170, 0.70710677
  %v189 = verf.f32.pop %v181
  %v190 = verf.f32.pop %v182
  %v191 = verf.f32.pop %v183
  %v192 = verf.f32.pop %v184
  %v193 = verf.f32.pop %v185
  %v194 = verf.f32.pop %v186
  %v195 = verf.f32.pop %v187
  %v196 = verf.f32.pop %v188
  %v197 = vadd.f32 %v189, 1.0
  %v198 = vadd.f32 %v190, 1.0
  %v199 = vadd.f32 %v191, 1.0
  %v200 = vadd.f32 %v192, 1.0
  %v201 = vadd.f32 %v193, 1.0
  %v202 = vadd.f32 %v194, 1.0
  %v203 = vadd.f32 %v195, 1.0
  %v204 = vadd.f32 %v196, 1.0
  %v205 = vmul.f32 %v173, %v197
  %v206 = vmul.f32 %v174, %v198
  %v207 = vmul.f32 %v175, %v199
  %v208 = vmul.f32 %v176, %v200
  %v209 = vmul.f32 %v177, %v201
  %v210 = vmul.f32 %v178, %v202
  %v211 = vmul.f32 %v179, %v203
  %v212 = vmul.f32 %v180, %v204
  %v213 = vld [vmem:[%s3] sm:$0xff]
  %v214 = vld [vmem:[%s3 + $0x8] sm:$0xff]
  %v215 = vld [vmem:[%s3 + $0x10] sm:$0xff]
  %v216 = vld [vmem:[%s3 + $0x18] sm:$0xff]
  %v217 = vld [vmem:[%s4] sm:$0x1]
  %v219 = vlaneseq
  %v220 = vshrl.u32 %v219, 7
  %v221 = vsub.s32 0, %v220
  %v222 = vrot.slane %v217, %v221
  %vm224 = vcmask 261120
  %v226 = vsel %vm224, %v205, 0
  %v229 = vsel %vm224, %v206, 0
  %v232 = vsel %vm224, %v207, 0
  %v235 = vsel %vm224, %v208, 0
  %v238 = vsel %vm224, %v209, 0
  %v241 = vsel %vm224, %v210, 0
  %v244 = vsel %vm224, %v211, 0
  %v247 = vsel %vm224, %v212, 0
  %249 = vmatprep.subr.mxu0 0.0
  %250 = vmatpush1.msra.mxu0 %v213
  %251 = vmatprep.subr.mxu0 0.0
  %252 = vmatpush1.msra.mxu0 %v214
  %253 = vmatprep.subr.mxu0 0.0
  %254 = vmatpush1.msra.mxu0 %v215
  %255 = vmatprep.subr.mxu0 0.0
  %256 = vmatpush1.msra.mxu0 %v216
  %257 = vmatprep.subr.mxu0 0.0
  %258 = vmatpush1.msra.mxu0 0.0
  %259 = vmatprep.subr.mxu0 0.0
  %260 = vmatpush1.msra.mxu0 0.0
  %261 = vmatprep.subr.mxu0 0.0
  %262 = vmatpush1.msra.mxu0 0.0
  %263 = vmatprep.subr.mxu0 0.0
  %264 = vmatpush1.msra.mxu0 0.0
  %265 = vmatprep.subr.mxu0 0.0
  %266 = vmatpush1.msra.mxu0 0.0
  %267 = vmatprep.subr.mxu0 0.0
  %268 = vmatpush1.msra.mxu0 0.0
  %269 = vmatprep.subr.mxu0 0.0
  %270 = vmatpush1.msra.mxu0 0.0
  %271 = vmatprep.subr.mxu0 0.0
  %272 = vmatpush1.msra.mxu0 0.0
  %273 = vmatprep.subr.mxu0 0.0
  %274 = vmatpush1.msra.mxu0 0.0
  %275 = vmatprep.subr.mxu0 0.0
  %276 = vmatpush1.msra.mxu0 0.0
  %277 = vmatprep.subr.mxu0 0.0
  %278 = vmatpush1.msra.mxu0 0.0
  %279 = vmatprep.subr.mxu0 0.0
  %280 = vmatpush1.msra.mxu0 0.0
  %281 = vmatprep.subr.mxu0 0.0
  %282 = vmatpush1.msra.mxu0 0.0
  %283 = vmatprep.subr.mxu0 0.0
  %284 = vmatpush1.msra.mxu0 0.0
  %285 = vmatprep.subr.mxu0 0.0
  %286 = vmatpush1.msra.mxu0 0.0
  %287 = vmatprep.subr.mxu0 0.0
  %288 = vmatpush1.msra.mxu0 0.0
  %289 = vmatprep.subr.mxu0 0.0
  %290 = vmatpush1.msra.mxu0 0.0
  %291 = vmatprep.subr.mxu0 0.0
  %292 = vmatpush1.msra.mxu0 0.0
  %293 = vmatprep.subr.mxu0 0.0
  %294 = vmatpush1.msra.mxu0 0.0
  %295 = vmatprep.subr.mxu0 0.0
  %296 = vmatpush1.msra.mxu0 0.0
  %297 = vmatprep.subr.mxu0 0.0
  %298 = vmatpush1.msra.mxu0 0.0
  %299 = vmatprep.subr.mxu0 0.0
  %300 = vmatpush1.msra.mxu0 0.0
  %301 = vmatprep.subr.mxu0 0.0
  %302 = vmatpush1.msra.mxu0 0.0
  %303 = vmatprep.subr.mxu0 0.0
  %304 = vmatpush1.msra.mxu0 0.0
  %305 = vmatprep.subr.mxu0 0.0
  %306 = vmatpush1.msra.mxu0 0.0
  %307 = vmatprep.subr.mxu0 0.0
  %308 = vmatpush1.msra.mxu0 0.0
  %309 = vmatprep.subr.mxu0 0.0
  %310 = vmatpush1.msra.mxu0 0.0
  %311 = vmatprep.subr.mxu0 0.0
  %312 = vmatpush1.msra.mxu0 0.0
  %313 = vmatprep.mubr.f32.mxu0 0.0
  %314 = vmatmul.mubr.f32.gmra.mrb[0].mxu0 %v226
  %v315 = vpop.f32.mrb[0].mxu0
  %v316 = vadd.f32 %v222, %v315
  %v317 = vpop.f32.mrb[0].mxu0
  %318 = vmatprep.mubr.f32.mxu0 0.0
  %319 = vmatmul.mubr.f32.gmra.mrb[0].mxu0 %v229
  %v320 = vpop.f32.mrb[0].mxu0
  %v321 = vadd.f32 %v222, %v320
  %v322 = vpop.f32.mrb[0].mxu0
  %323 = vmatprep.mubr.f32.mxu0 0.0
  %324 = vmatmul.mubr.f32.gmra.mrb[0].mxu0 %v232
  %v325 = vpop.f32.mrb[0].mxu0
  %v326 = vadd.f32 %v222, %v325
  %v327 = vpop.f32.mrb[0].mxu0
  %328 = vmatprep.mubr.f32.mxu0 0.0
  %329 = vmatmul.mubr.f32.gmra.mrb[0].mxu0 %v235
  %v330 = vpop.f32.mrb[0].mxu0
  %v331 = vadd.f32 %v222, %v330
  %v332 = vpop.f32.mrb[0].mxu0
  %333 = vmatprep.mubr.f32.mxu0 0.0
  %334 = vmatmul.mubr.f32.gmra.mrb[0].mxu0 %v238
  %v335 = vpop.f32.mrb[0].mxu0
  %v336 = vadd.f32 %v222, %v335
  %v337 = vpop.f32.mrb[0].mxu0
  %338 = vmatprep.mubr.f32.mxu0 0.0
  %339 = vmatmul.mubr.f32.gmra.mrb[0].mxu0 %v241
  %v340 = vpop.f32.mrb[0].mxu0
  %v341 = vadd.f32 %v222, %v340
  %v342 = vpop.f32.mrb[0].mxu0
  %343 = vmatprep.mubr.f32.mxu0 0.0
  %344 = vmatmul.mubr.f32.gmra.mrb[0].mxu0 %v244
  %v345 = vpop.f32.mrb[0].mxu0
  %v346 = vadd.f32 %v222, %v345
  %v347 = vpop.f32.mrb[0].mxu0
  %348 = vmatprep.mubr.f32.mxu0 0.0
  %349 = vmatmul.mubr.f32.gmra.mrb[0].mxu0 %v247
  %v350 = vpop.f32.mrb[0].mxu0
  %v351 = vadd.f32 %v222, %v350
  %v352 = vpop.f32.mrb[0].mxu0
  %353 = vdwg.mxu0
  %vm354 = vcmask 130048
  %355 = vst.msk [vmem:[%s5] sm:$0xff] %vm354, %v316
  %356 = vst.msk [vmem:[%s5 + $0x8] sm:$0xff] %vm354, %v321
  %357 = vst.msk [vmem:[%s5 + $0x10] sm:$0xff] %vm354, %v326
  %358 = vst.msk [vmem:[%s5 + $0x18] sm:$0xff] %vm354, %v331
  %359 = vst.msk [vmem:[%s5 + $0x20] sm:$0xff] %vm354, %v336
  %360 = vst.msk [vmem:[%s5 + $0x28] sm:$0xff] %vm354, %v341
  %361 = vst.msk [vmem:[%s5 + $0x30] sm:$0xff] %vm354, %v346
  %362 = vst.msk [vmem:[%s5 + $0x38] sm:$0xff] %vm354, %v351
  // Predicated region
  $region22: #{vanilla_encoder.1} parent=0 // pred_check
    _
  $region23: #{vanilla_encoder.1} parent=0 // pred_check_branch
    %364 = sbr.rel (0) target = $region25
  $region24: #{vanilla_encoder.1} parent=0 // pred_region
    _
  $region25: #{vanilla_encoder.1} parent=0 // pred_fallthru
    _
  // Predicated region
  $region26: #{vanilla_encoder.1} parent=0 // pred_check
    _
  $region27: #{vanilla_encoder.1} parent=0 // pred_check_branch
    %366 = sbr.rel (0) target = $region29
  $region28: #{vanilla_encoder.1} parent=0 // pred_region
    _
  $region29: #{vanilla_encoder.1} parent=0 // pred_fallthru
    _

</llo_original>
